<compile_context>
chip_gen: v6e
topology: v6e:2x2x1
jax: 0.10.0
libtpu: 0.0.40
codegen_flags: <defaults>
</compile_context>

<pallas_src>
import functools

import jax
import jax.numpy as jnp
import numpy as np
from jax.experimental import pallas as pl
from jax.experimental.pallas import tpu as pltpu


def _round_up(v, m):
    return ((v + m - 1) // m) * m


def _gru_kernel(xT_ref, hT_ref, wx_ref, wah_ref, wbh_ref, ba_ref, bb_ref,
                out_ref, *, hidden, clip_value):
    Dh = hidden
    xT = xT_ref[...]                       # (Dx, TM)  matmul dtype
    hT = hT_ref[...]                       # (Dh, TM)  matmul dtype
    h = hT.astype(jnp.float32)             # gating math in f32

    # Fused x-contribution for r, u and c in a single MXU pass: (3*Dh, TM).
    xw = jnp.dot(wx_ref[...], xT, preferred_element_type=jnp.float32)
    # h-contribution for r and u: (2*Dh, TM).
    hw = jnp.dot(wah_ref[...], hT, preferred_element_type=jnp.float32)

    # Sublane slices at multiples of 8 (Dh=32) — no cross-lane shuffles.
    ru = xw[:2 * Dh] + hw + ba_ref[...]    # bias (2*Dh,1) broadcasts over lanes
    r = jax.nn.sigmoid(ru[:Dh])
    u = jax.nn.sigmoid(ru[Dh:])            # forget_bias already folded into ba

    rh = (r * h).astype(hT.dtype)
    c = jnp.tanh(xw[2 * Dh:]
                 + jnp.dot(wbh_ref[...], rh, preferred_element_type=jnp.float32)
                 + bb_ref[...])

    new_h = u * h + (1.0 - u) * c
    if np.isfinite(clip_value):            # trace-time skip when clip is inf
        new_h = jnp.clip(new_h, -clip_value, clip_value)
    out_ref[...] = new_h.astype(out_ref.dtype)


def gru_cell_pallas(x, h, wa, ba, wb, bb, *, forget_bias=0.0,
                    clip_value=float(np.inf), matmul_dtype=jnp.float32,
                    block_m=512):
    """x: (B, N, Dx), h: (B, N, Dh); wa: (2*Dh, Dx+Dh), ba: (2*Dh,),
    wb: (Dh, Dx+Dh), bb: (Dh,)."""
    B, N, Dx = x.shape
    Dh = h.shape[-1]
    M = B * N

    # Lane-dense layout: rows on lanes, features on sublanes.
    xT = x.reshape(M, Dx).T.astype(matmul_dtype)          # (Dx, M)
    hT = h.reshape(M, Dh).T.astype(matmul_dtype)          # (Dh, M)

    # Row tile: lane dim must be 128-divisible (or full extent); pad M up.
    tm = min(block_m, _round_up(M, 128))
    m_pad = _round_up(M, tm)
    if m_pad != M:
        xT = jnp.pad(xT, ((0, 0), (0, m_pad - M)))
        hT = jnp.pad(hT, ((0, 0), (0, m_pad - M)))

    # Weight prep: fused x-weights, split h-weights, forget_bias folded in.
    w_x = jnp.concatenate([wa[:, :Dx], wb[:, :Dx]], axis=0).astype(matmul_dtype)  # (3*Dh, Dx)
    wa_h = wa[:, Dx:].astype(matmul_dtype)                                         # (2*Dh, Dh)
    wb_h = wb[:, Dx:].astype(matmul_dtype)                                         # (Dh, Dh)
    ba2 = ba.astype(jnp.float32)
    ba2 = ba2.at[Dh:].add(jnp.float32(forget_bias)).reshape(2 * Dh, 1)
    bb2 = bb.astype(jnp.float32).reshape(Dh, 1)

    kernel = functools.partial(_gru_kernel, hidden=Dh,
                               clip_value=float(clip_value))

    resident = lambda shape: pl.BlockSpec(shape, lambda i: (0,) * len(shape))
    grid = (m_pad // tm,)

    new_hT = pl.pallas_call(
        kernel,
        out_shape=jax.ShapeDtypeStruct((Dh, m_pad), jnp.float32),
        grid_spec=pltpu.PrefetchScalarGridSpec(
            num_scalar_prefetch=0,
            grid=grid,
            in_specs=[
                pl.BlockSpec((Dx, tm), lambda i: (0, i)),   # xT tile (streamed)
                pl.BlockSpec((Dh, tm), lambda i: (0, i)),   # hT tile (streamed)
                resident((3 * Dh, Dx)),                     # W_x   (resident)
                resident((2 * Dh, Dh)),                     # Wa_h  (resident)
                resident((Dh, Dh)),                         # Wb_h  (resident)
                resident((2 * Dh, 1)),                      # ba (+forget_bias)
                resident((Dh, 1)),                          # bb
            ],
            out_specs=pl.BlockSpec((Dh, tm), lambda i: (0, i)),
        ),
        compiler_params=pltpu.CompilerParams(
            dimension_semantics=("parallel",),              # megacore on v7x
            vmem_limit_bytes=32 * 1024 * 1024,              # fits v5e/v6e/v7x
        ),
    )(xT, hT, w_x, wa_h, wb_h, ba2, bb2)

    new_h = new_hT[:, :M].T.reshape(B, N, Dh).astype(x.dtype)
    return new_h, new_h


def _reference(x, h, wa, ba, wb, bb, forget_bias=0.0, clip_value=float(np.inf)):
    xh = jnp.concatenate([x, h], axis=2)
    ru = xh @ wa.T + ba
    r, u = jnp.split(ru, 2, axis=2)
    r = jax.nn.sigmoid(r)
    u = jax.nn.sigmoid(u + forget_bias)
    xrh = jnp.concatenate([x, r * h], axis=2)
    c = jnp.tanh(xrh @ wb.T + bb)
    new_h = u * h + (1.0 - u) * c
    new_h = jnp.clip(new_h, -clip_value, clip_value)
    return new_h


if __name__ == "__main__":
    # Small shapes: batch=2, nodes=8, input feat=16, hidden=32.
    B, N, Dx, Dh = 2, 8, 16, 32
    map1 = (Dx + Dh, 2 * Dh)   # mat_a: Linear(48, 64)
    map2 = (Dx + Dh, Dh)       # mat_b: Linear(48, 32)

    key = jax.random.PRNGKey(0)
    kx, kh, kwa, kba, kwb, kbb = jax.random.split(key, 6)

    x = jax.random.normal(kx, (B, N, Dx), dtype=jnp.float32)
    h = jax.random.normal(kh, (B, N, Dh), dtype=jnp.float32)

    # Deterministic parameter init (uniform ~ nn.Linear default bound 1/sqrt(in)).
    bound_a = 1.0 / np.sqrt(map1[0])
    bound_b = 1.0 / np.sqrt(map2[0])
    wa = jax.random.uniform(kwa, (map1[1], map1[0]), jnp.float32, -bound_a, bound_a)
    ba = jax.random.uniform(kba, (map1[1],), jnp.float32, -bound_a, bound_a)
    wb = jax.random.uniform(kwb, (map2[1], map2[0]), jnp.float32, -bound_b, bound_b)
    bb = jax.random.uniform(kbb, (map2[1],), jnp.float32, -bound_b, bound_b)

    # f32 MXU path, default forget_bias / infinite clip (clip skipped at trace).
    new_h, _ = gru_cell_pallas(x, h, wa, ba, wb, bb,
                               forget_bias=0.0, clip_value=float(np.inf))
    new_h = jax.block_until_ready(new_h)
    ref = _reference(x, h, wa, ba, wb, bb)
    np.testing.assert_allclose(np.asarray(new_h), np.asarray(ref),
                               rtol=1e-5, atol=1e-5)

    # bf16 MXU path with non-default forget_bias and a finite clip.
    new_h_bf16, _ = gru_cell_pallas(x, h, wa, ba, wb, bb,
                                    forget_bias=0.5, clip_value=5.0,
                                    matmul_dtype=jnp.bfloat16)
    new_h_bf16 = jax.block_until_ready(new_h_bf16)
    ref2 = _reference(x, h, wa, ba, wb, bb, forget_bias=0.5, clip_value=5.0)
    np.testing.assert_allclose(np.asarray(new_h_bf16), np.asarray(ref2),
                               rtol=5e-2, atol=5e-2)

    print("KERNEL_OK")
</pallas_src>

<mosaic_0001>
module attributes {stable_mosaic.version = 11 : i64} {
  func.func @_gru_kernel(%arg0: i32, %arg1: memref<16x128xf32, #tpu.memory_space<vmem>>, %arg2: memref<32x128xf32, #tpu.memory_space<vmem>>, %arg3: memref<96x16xf32, #tpu.memory_space<vmem>>, %arg4: memref<64x32xf32, #tpu.memory_space<vmem>>, %arg5: memref<32x32xf32, #tpu.memory_space<vmem>>, %arg6: memref<64x1xf32, #tpu.memory_space<vmem>>, %arg7: memref<32x1xf32, #tpu.memory_space<vmem>>, %arg8: memref<32x128xf32, #tpu.memory_space<vmem>>) attributes {dimension_semantics = [#tpu.dimension_semantics<parallel>], iteration_bounds = array<i64: 1>, scalar_prefetch = 0 : i64, scratch_operands = 0 : i64, tpu.core_type = #tpu.core_type<tc>, window_params = [{transform_indices = @transform_0, window_bounds = array<i64: 16, 128>}, {transform_indices = @transform_1, window_bounds = array<i64: 32, 128>}, {pipeline_mode = #tpu.pipeline_mode<synchronous>, transform_indices = @transform_2, window_bounds = array<i64: 96, 16>}, {pipeline_mode = #tpu.pipeline_mode<synchronous>, transform_indices = @transform_3, window_bounds = array<i64: 64, 32>}, {pipeline_mode = #tpu.pipeline_mode<synchronous>, transform_indices = @transform_4, window_bounds = array<i64: 32, 32>}, {pipeline_mode = #tpu.pipeline_mode<synchronous>, transform_indices = @transform_5, window_bounds = array<i64: 64, 1>}, {pipeline_mode = #tpu.pipeline_mode<synchronous>, transform_indices = @transform_6, window_bounds = array<i64: 32, 1>}, {transform_indices = @transform_7, window_bounds = array<i64: 32, 128>}]} {
    %c0 = arith.constant 0 : index
    %c0_0 = arith.constant 0 : index
    %0 = vector.load %arg1[%c0, %c0_0] : memref<16x128xf32, #tpu.memory_space<vmem>>, vector<16x128xf32>
    %c0_1 = arith.constant 0 : index
    %c0_2 = arith.constant 0 : index
    %1 = vector.load %arg2[%c0_1, %c0_2] : memref<32x128xf32, #tpu.memory_space<vmem>>, vector<32x128xf32>
    %c0_3 = arith.constant 0 : index
    %c0_4 = arith.constant 0 : index
    %2 = vector.load %arg3[%c0_3, %c0_4] : memref<96x16xf32, #tpu.memory_space<vmem>>, vector<96x16xf32>
    %cst = arith.constant dense<0.000000e+00> : vector<96x128xf32>
    %3 = tpu.matmul %2, %0, %cst {dimension_numbers = #tpu.dot_dimension_numbers<[1], [0], [0], [1], [0, 0, 1, 1], [], []>} : vector<96x16xf32>, vector<16x128xf32>, vector<96x128xf32> -> vector<96x128xf32>
    %c0_5 = arith.constant 0 : index
    %c0_6 = arith.constant 0 : index
    %4 = vector.load %arg4[%c0_5, %c0_6] : memref<64x32xf32, #tpu.memory_space<vmem>>, vector<64x32xf32>
    %cst_7 = arith.constant dense<0.000000e+00> : vector<64x128xf32>
    %5 = tpu.matmul %4, %1, %cst_7 {dimension_numbers = #tpu.dot_dimension_numbers<[1], [0], [0], [1], [0, 0, 1, 1], [], []>} : vector<64x32xf32>, vector<32x128xf32>, vector<64x128xf32> -> vector<64x128xf32>
    %6 = vector.extract_strided_slice %3 {offsets = [0, 0], sizes = [64, 128], strides = [1, 1]} : vector<96x128xf32> to vector<64x128xf32>
    %7 = arith.addf %6, %5 : vector<64x128xf32>
    %c0_8 = arith.constant 0 : index
    %c0_9 = arith.constant 0 : index
    %8 = vector.load %arg6[%c0_8, %c0_9] : memref<64x1xf32, #tpu.memory_space<vmem>>, vector<64x1xf32>
    %9 = vector.broadcast %8 : vector<64x1xf32> to vector<64x128xf32>
    %10 = arith.addf %7, %9 : vector<64x128xf32>
    %11 = vector.extract_strided_slice %10 {offsets = [0, 0], sizes = [32, 128], strides = [1, 1]} : vector<64x128xf32> to vector<32x128xf32>
    %12 = arith.negf %11 : vector<32x128xf32>
    %13 = math.exp %12 : vector<32x128xf32>
    %cst_10 = arith.constant 1.000000e+00 : f32
    %14 = vector.broadcast %cst_10 : f32 to vector<32x128xf32>
    %15 = arith.addf %14, %13 : vector<32x128xf32>
    %16 = arith.divf %14, %15 : vector<32x128xf32>
    %17 = vector.extract_strided_slice %10 {offsets = [32, 0], sizes = [32, 128], strides = [1, 1]} : vector<64x128xf32> to vector<32x128xf32>
    %18 = arith.negf %17 : vector<32x128xf32>
    %19 = math.exp %18 : vector<32x128xf32>
    %cst_11 = arith.constant 1.000000e+00 : f32
    %20 = vector.broadcast %cst_11 : f32 to vector<32x128xf32>
    %21 = arith.addf %20, %19 : vector<32x128xf32>
    %22 = arith.divf %20, %21 : vector<32x128xf32>
    %23 = arith.mulf %16, %1 : vector<32x128xf32>
    %24 = vector.extract_strided_slice %3 {offsets = [64, 0], sizes = [32, 128], strides = [1, 1]} : vector<96x128xf32> to vector<32x128xf32>
    %c0_12 = arith.constant 0 : index
    %c0_13 = arith.constant 0 : index
    %25 = vector.load %arg5[%c0_12, %c0_13] : memref<32x32xf32, #tpu.memory_space<vmem>>, vector<32x32xf32>
    %cst_14 = arith.constant dense<0.000000e+00> : vector<32x128xf32>
    %26 = tpu.matmul %25, %23, %cst_14 {dimension_numbers = #tpu.dot_dimension_numbers<[1], [0], [0], [1], [0, 0, 1, 1], [], []>} : vector<32x32xf32>, vector<32x128xf32>, vector<32x128xf32> -> vector<32x128xf32>
    %27 = arith.addf %24, %26 : vector<32x128xf32>
    %c0_15 = arith.constant 0 : index
    %c0_16 = arith.constant 0 : index
    %28 = vector.load %arg7[%c0_15, %c0_16] : memref<32x1xf32, #tpu.memory_space<vmem>>, vector<32x1xf32>
    %29 = vector.broadcast %28 : vector<32x1xf32> to vector<32x128xf32>
    %30 = arith.addf %27, %29 : vector<32x128xf32>
    %31 = math.tanh %30 : vector<32x128xf32>
    %32 = arith.mulf %22, %1 : vector<32x128xf32>
    %cst_17 = arith.constant 1.000000e+00 : f32
    %33 = vector.broadcast %cst_17 : f32 to vector<32x128xf32>
    %34 = arith.subf %33, %22 : vector<32x128xf32>
    %35 = arith.mulf %34, %31 : vector<32x128xf32>
    %36 = arith.addf %32, %35 : vector<32x128xf32>
    %c0_18 = arith.constant 0 : index
    %c0_19 = arith.constant 0 : index
    %37 = vector.load %arg8[%c0_18, %c0_19] : memref<32x128xf32, #tpu.memory_space<vmem>>, vector<32x128xf32>
    tpu.vector_store %arg8[%c0_18, %c0_19], %36 {strides = array<i32>} : memref<32x128xf32, #tpu.memory_space<vmem>>, vector<32x128xf32>,
    return
  }
  func.func @transform_0(%arg0: i32) -> (i32, i32) {
    %c0_i32 = arith.constant 0 : i32
    %c0_i32_0 = arith.constant 0 : i32
    return %c0_i32, %arg0 : i32, i32
  }
  func.func @transform_1(%arg0: i32) -> (i32, i32) {
    %c0_i32 = arith.constant 0 : i32
    %c0_i32_0 = arith.constant 0 : i32
    return %c0_i32, %arg0 : i32, i32
  }
  func.func @transform_2(%arg0: i32) -> (i32, i32) {
    %c0_i32 = arith.constant 0 : i32
    %c0_i32_0 = arith.constant 0 : i32
    %c0_i32_1 = arith.constant 0 : i32
    return %c0_i32, %c0_i32_0 : i32, i32
  }
  func.func @transform_3(%arg0: i32) -> (i32, i32) {
    %c0_i32 = arith.constant 0 : i32
    %c0_i32_0 = arith.constant 0 : i32
    %c0_i32_1 = arith.constant 0 : i32
    return %c0_i32, %c0_i32_0 : i32, i32
  }
  func.func @transform_4(%arg0: i32) -> (i32, i32) {
    %c0_i32 = arith.constant 0 : i32
    %c0_i32_0 = arith.constant 0 : i32
    %c0_i32_1 = arith.constant 0 : i32
    return %c0_i32, %c0_i32_0 : i32, i32
  }
  func.func @transform_5(%arg0: i32) -> (i32, i32) {
    %c0_i32 = arith.constant 0 : i32
    %c0_i32_0 = arith.constant 0 : i32
    %c0_i32_1 = arith.constant 0 : i32
    return %c0_i32, %c0_i32_0 : i32, i32
  }
  func.func @transform_6(%arg0: i32) -> (i32, i32) {
    %c0_i32 = arith.constant 0 : i32
    %c0_i32_0 = arith.constant 0 : i32
    %c0_i32_1 = arith.constant 0 : i32
    return %c0_i32, %c0_i32_0 : i32, i32
  }
  func.func @transform_7(%arg0: i32) -> (i32, i32) {
    %c0_i32 = arith.constant 0 : i32
    %c0_i32_0 = arith.constant 0 : i32
    return %c0_i32, %arg0 : i32, i32
  }
}

</mosaic_0001>

<llo_original>
// kernel: tpu_custom_call.1
$region0: #{tpu_custom_call.1}
  #allocation0 [shape = 'u32[]', space=smem, size = 0x4, offset = 0x4, fixed_abs, tag = 'smem constant byte address 0x4 - core index']
  #allocation1 [shape = 'u32[144,128]{1,0:T(1,128)}', space=vmem, size = 0x12000, scoped, tag = 'internal scratch']
  %s0 = inlined_call_operand.vmem [shape: f32[16,128], index: 0, kind: input, shape index: {}]
  %s1 = inlined_call_operand.vmem [shape: f32[32,128], index: 1, kind: input, shape index: {}]
  %s2 = inlined_call_operand.vmem [shape: f32[96,16], index: 2, kind: input, shape index: {}]
  %s3 = inlined_call_operand.vmem [shape: f32[64,32], index: 3, kind: input, shape index: {}]
  %s4 = inlined_call_operand.vmem [shape: f32[32,32], index: 4, kind: input, shape index: {}]
  %s5 = inlined_call_operand.vmem [shape: f32[64,1], index: 5, kind: input, shape index: {}]
  %s6 = inlined_call_operand.vmem [shape: f32[32,1], index: 6, kind: input, shape index: {}]
  %s7 = inlined_call_operand.hbm [shape: f32[32,128], index: 7, kind: output, shape index: {}]
  %s8 = sld [smem:[#allocation0]]
  $region38: #{tpu_custom_call.1} parent=0
    _
  %s10 = ssub.s32 1, %s8
  %s11 = scalar_select 0, %s10, %s8
  $region1: #{tpu_custom_call.1} parent=0
    #allocation2 [shape = 'u8[16384]{0}', space=vmem, size = 0x4000, scoped, tag = 'output window, operand 0, single buffered']
    #allocation3 [shape = 's32[1]{0}', space=sflag, size = 0x4, scoped, tag = 'scoped memory for tpu_custom_call.1']
    %12 = vsyncpa [#allocation3], 0
    // Predicated region
    $region2: #{tpu_custom_call.1} parent=1 // pred_check
      _
    $region3: #{tpu_custom_call.1} parent=1 // pred_check_branch
      %14 = sbr.rel (0) target = $region5
    $region4: #{tpu_custom_call.1} parent=1 // pred_region
      _
    $region5: #{tpu_custom_call.1} parent=1 // pred_fallthru
      _
    // Predicated region
    $region6: #{tpu_custom_call.1} parent=1 // pred_check
      _
    $region7: #{tpu_custom_call.1} parent=1 // pred_check_branch
      %16 = sbr.rel (0) target = $region9
    $region8: #{tpu_custom_call.1} parent=1 // pred_region
      _
    $region9: #{tpu_custom_call.1} parent=1 // pred_fallthru
      _
    // Predicated region
    $region10: #{tpu_custom_call.1} parent=1 // pred_check
      _
    $region11: #{tpu_custom_call.1} parent=1 // pred_check_branch
      %18 = sbr.rel (0) target = $region13
    $region12: #{tpu_custom_call.1} parent=1 // pred_region
      _
    $region13: #{tpu_custom_call.1} parent=1 // pred_fallthru
      _
    // Predicated region
    $region14: #{tpu_custom_call.1} parent=1 // pred_check
      _
    $region15: #{tpu_custom_call.1} parent=1 // pred_check_branch
      %20 = sbr.rel (0) target = $region17
    $region16: #{tpu_custom_call.1} parent=1 // pred_region
      _
    $region17: #{tpu_custom_call.1} parent=1 // pred_fallthru
      _
    // Predicated region
    $region18: #{tpu_custom_call.1} parent=1 // pred_check
      _
    $region19: #{tpu_custom_call.1} parent=1 // pred_check_branch
      %22 = sbr.rel (0) target = $region21
    $region20: #{tpu_custom_call.1} parent=1 // pred_region
      _
    $region21: #{tpu_custom_call.1} parent=1 // pred_fallthru
      _
    // Predicated region
    $region22: #{tpu_custom_call.1} parent=1 // pred_check
      _
    $region23: #{tpu_custom_call.1} parent=1 // pred_check_branch
      %24 = sbr.rel (0) target = $region25
    $region24: #{tpu_custom_call.1} parent=1 // pred_region
      _
    $region25: #{tpu_custom_call.1} parent=1 // pred_fallthru
      _
    // Predicated region
    $region26: #{tpu_custom_call.1} parent=1 // pred_check
      _
    $region27: #{tpu_custom_call.1} parent=1 // pred_check_branch
      %26 = sbr.rel (0) target = $region29
    $region28: #{tpu_custom_call.1} parent=1 // pred_region
      _
    $region29: #{tpu_custom_call.1} parent=1 // pred_fallthru
      _
    %v27 = vld [vmem:[%s0] sm:$0xff]
    %v28 = vld [vmem:[%s0 + $0x8] sm:$0xff]
    %v29 = vld [vmem:[%s1] sm:$0xff]
    %v30 = vld [vmem:[%s1 + $0x8] sm:$0xff]
    %v31 = vld [vmem:[%s1 + $0x10] sm:$0xff]
    %v32 = vld [vmem:[%s1 + $0x18] sm:$0xff]
    %v33 = vld [vmem:[%s2] sm:$0xff]
    %v34 = vld [vmem:[%s2 + $0x8] sm:$0xff]
    %v35 = vld [vmem:[%s2 + $0x10] sm:$0xff]
    %v36 = vld [vmem:[%s2 + $0x18] sm:$0xff]
    %v37 = vld [vmem:[%s2 + $0x20] sm:$0xff]
    %v38 = vld [vmem:[%s2 + $0x28] sm:$0xff]
    %v39 = vld [vmem:[%s2 + $0x30] sm:$0xff]
    %v40 = vld [vmem:[%s2 + $0x38] sm:$0xff]
    %v41 = vld [vmem:[%s2 + $0x40] sm:$0xff]
    %v42 = vld [vmem:[%s2 + $0x48] sm:$0xff]
    %v43 = vld [vmem:[%s2 + $0x50] sm:$0xff]
    %v44 = vld [vmem:[%s2 + $0x58] sm:$0xff]
    %vm45 = vcmask 130048
    %v47 = vsel %vm45, %v33, 0
    %v50 = vsel %vm45, %v34, 0
    %v53 = vsel %vm45, %v35, 0
    %v56 = vsel %vm45, %v36, 0
    %v59 = vsel %vm45, %v37, 0
    %v62 = vsel %vm45, %v38, 0
    %v65 = vsel %vm45, %v39, 0
    %v68 = vsel %vm45, %v40, 0
    %v71 = vsel %vm45, %v41, 0
    %v74 = vsel %vm45, %v42, 0
    %v77 = vsel %vm45, %v43, 0
    %v80 = vsel %vm45, %v44, 0
    %82 = vmatprep.subr.mxu0 0.0
    %83 = vmatpush1.msra.mxu0 0.0
    %84 = vmatprep.subr.mxu0 0.0
    %85 = vmatpush1.msra.mxu0 0.0
    %86 = vmatprep.subr.mxu0 0.0
    %87 = vmatpush1.msra.mxu0 0.0
    %88 = vmatprep.subr.mxu0 0.0
    %89 = vmatpush1.msra.mxu0 0.0
    %90 = vmatprep.subr.mxu0 0.0
    %91 = vmatpush1.msra.mxu0 0.0
    %92 = vmatprep.subr.mxu0 0.0
    %93 = vmatpush1.msra.mxu0 0.0
    %94 = vmatprep.subr.mxu0 0.0
    %95 = vmatpush1.msra.mxu0 0.0
    %96 = vmatprep.subr.mxu0 0.0
    %97 = vmatpush1.msra.mxu0 0.0
    %98 = vmatprep.subr.mxu0 0.0
    %99 = vmatpush1.msra.mxu0 0.0
    %100 = vmatprep.subr.mxu0 0.0
    %101 = vmatpush1.msra.mxu0 0.0
    %102 = vmatprep.subr.mxu0 0.0
    %103 = vmatpush1.msra.mxu0 0.0
    %104 = vmatprep.subr.mxu0 0.0
    %105 = vmatpush1.msra.mxu0 0.0
    %106 = vmatprep.subr.mxu0 0.0
    %107 = vmatpush1.msra.mxu0 0.0
    %108 = vmatprep.subr.mxu0 0.0
    %109 = vmatpush1.msra.mxu0 0.0
    %110 = vmatprep.subr.mxu0 0.0
    %111 = vmatpush1.msra.mxu0 %v28
    %112 = vmatprep.subr.mxu0 0.0
    %113 = vmatpush1.msra.mxu0 %v27
    %114 = vmatprep.subr.mxu0 0.0
    %115 = vmatpush2.msra.mxu0 0.0
    %116 = vmatprep.subr.mxu0 0.0
    %117 = vmatpush2.msra.mxu0 0.0
    %118 = vmatprep.subr.mxu0 0.0
    %119 = vmatpush2.msra.mxu0 0.0
    %120 = vmatprep.subr.mxu0 0.0
    %121 = vmatpush2.msra.mxu0 0.0
    %122 = vmatprep.subr.mxu0 0.0
    %123 = vmatpush2.msra.mxu0 0.0
    %124 = vmatprep.subr.mxu0 0.0
    %125 = vmatpush2.msra.mxu0 0.0
    %126 = vmatprep.subr.mxu0 0.0
    %127 = vmatpush2.msra.mxu0 0.0
    %128 = vmatprep.subr.mxu0 0.0
    %129 = vmatpush2.msra.mxu0 0.0
    %130 = vmatprep.subr.mxu0 0.0
    %131 = vmatpush2.msra.mxu0 0.0
    %132 = vmatprep.subr.mxu0 0.0
    %133 = vmatpush2.msra.mxu0 0.0
    %134 = vmatprep.subr.mxu0 0.0
    %135 = vmatpush2.msra.mxu0 0.0
    %136 = vmatprep.subr.mxu0 0.0
    %137 = vmatpush2.msra.mxu0 0.0
    %138 = vmatprep.subr.mxu0 0.0
    %139 = vmatpush2.msra.mxu0 0.0
    %140 = vmatprep.subr.mxu0 0.0
    %141 = vmatpush2.msra.mxu0 0.0
    %142 = vmatprep.subr.mxu0 0.0
    %143 = vmatpush2.msra.mxu0 0.0
    %144 = vmatprep.subr.mxu0 0.0
    %145 = vmatpush2.msra.mxu0 0.0
    %146 = vmatprep.mubr.f32.mxu0 0.0
    %147 = vmatmul.mubr.f32.gmra.mxu0 %v47
    %v148 = vpop.f32.mrf.mxu0
    %v149 = vadd.f32 0.0, %v148
    %v150 = vpop.f32.mrf.mxu0
    %151 = vmatprep.mubr.f32.mxu0 0.0
    %152 = vmatmul.mubr.f32.gmra.mxu0 %v50
    %v153 = vpop.f32.mrf.mxu0
    %v154 = vadd.f32 0.0, %v153
    %v155 = vpop.f32.mrf.mxu0
    %156 = vmatprep.mubr.f32.mxu0 0.0
    %157 = vmatmul.mubr.f32.gmra.mxu0 %v53
    %v158 = vpop.f32.mrf.mxu0
    %v159 = vadd.f32 0.0, %v158
    %v160 = vpop.f32.mrf.mxu0
    %161 = vmatprep.mubr.f32.mxu0 0.0
    %162 = vmatmul.mubr.f32.gmra.mxu0 %v56
    %v163 = vpop.f32.mrf.mxu0
    %v164 = vadd.f32 0.0, %v163
    %v165 = vpop.f32.mrf.mxu0
    %166 = vmatprep.mubr.f32.mxu0 0.0
    %167 = vmatmul.mubr.f32.gmra.mxu0 %v59
    %v168 = vpop.f32.mrf.mxu0
    %v169 = vadd.f32 0.0, %v168
    %v170 = vpop.f32.mrf.mxu0
    %171 = vmatprep.mubr.f32.mxu0 0.0
    %172 = vmatmul.mubr.f32.gmra.mxu0 %v62
    %v173 = vpop.f32.mrf.mxu0
    %v174 = vadd.f32 0.0, %v173
    %v175 = vpop.f32.mrf.mxu0
    %176 = vmatprep.mubr.f32.mxu0 0.0
    %177 = vmatmul.mubr.f32.gmra.mxu0 %v65
    %v178 = vpop.f32.mrf.mxu0
    %v179 = vadd.f32 0.0, %v178
    %v180 = vpop.f32.mrf.mxu0
    %181 = vmatprep.mubr.f32.mxu0 0.0
    %182 = vmatmul.mubr.f32.gmra.mxu0 %v68
    %v183 = vpop.f32.mrf.mxu0
    %v184 = vadd.f32 0.0, %v183
    %v185 = vpop.f32.mrf.mxu0
    %186 = vmatprep.mubr.f32.mxu0 0.0
    %187 = vmatmul.mubr.f32.gmra.mxu0 %v71
    %v188 = vpop.f32.mrf.mxu0
    %v189 = vadd.f32 0.0, %v188
    %v190 = vpop.f32.mrf.mxu0
    %191 = vmatprep.mubr.f32.mxu0 0.0
    %192 = vmatmul.mubr.f32.gmra.mxu0 %v74
    %v193 = vpop.f32.mrf.mxu0
    %v194 = vadd.f32 0.0, %v193
    %v195 = vpop.f32.mrf.mxu0
    %196 = vmatprep.mubr.f32.mxu0 0.0
    %197 = vmatmul.mubr.f32.gmra.mxu0 %v77
    %v198 = vpop.f32.mrf.mxu0
    %v199 = vadd.f32 0.0, %v198
    %v200 = vpop.f32.mrf.mxu0
    %201 = vmatprep.mubr.f32.mxu0 0.0
    %202 = vmatmul.mubr.f32.gmra.mxu0 %v80
    %v203 = vpop.f32.mrf.mxu0
    %v204 = vadd.f32 0.0, %v203
    %v205 = vpop.f32.mrf.mxu0
    %206 = vdwg.mxu0
    %v207 = vld [vmem:[%s3] sm:$0xff]
    %v208 = vld [vmem:[%s3 + $0x8] sm:$0xff]
    %v209 = vld [vmem:[%s3 + $0x10] sm:$0xff]
    %v210 = vld [vmem:[%s3 + $0x18] sm:$0xff]
    %v211 = vld [vmem:[%s3 + $0x20] sm:$0xff]
    %v212 = vld [vmem:[%s3 + $0x28] sm:$0xff]
    %v213 = vld [vmem:[%s3 + $0x30] sm:$0xff]
    %v214 = vld [vmem:[%s3 + $0x38] sm:$0xff]
    %vm215 = vcmask 261120
    %v217 = vsel %vm215, %v207, 0
    %v220 = vsel %vm215, %v208, 0
    %v223 = vsel %vm215, %v209, 0
    %v226 = vsel %vm215, %v210, 0
    %v229 = vsel %vm215, %v211, 0
    %v232 = vsel %vm215, %v212, 0
    %v235 = vsel %vm215, %v213, 0
    %v238 = vsel %vm215, %v214, 0
    %240 = vmatprep.subr.mxu0 0.0
    %241 = vmatpush1.msra.mxu0 0.0
    %242 = vmatprep.subr.mxu0 0.0
    %243 = vmatpush1.msra.mxu0 0.0
    %244 = vmatprep.subr.mxu0 0.0
    %245 = vmatpush1.msra.mxu0 0.0
    %246 = vmatprep.subr.mxu0 0.0
    %247 = vmatpush1.msra.mxu0 0.0
    %248 = vmatprep.subr.mxu0 0.0
    %249 = vmatpush1.msra.mxu0 0.0
    %250 = vmatprep.subr.mxu0 0.0
    %251 = vmatpush1.msra.mxu0 0.0
    %252 = vmatprep.subr.mxu0 0.0
    %253 = vmatpush1.msra.mxu0 0.0
    %254 = vmatprep.subr.mxu0 0.0
    %255 = vmatpush1.msra.mxu0 0.0
    %256 = vmatprep.subr.mxu0 0.0
    %257 = vmatpush1.msra.mxu0 0.0
    %258 = vmatprep.subr.mxu0 0.0
    %259 = vmatpush1.msra.mxu0 0.0
    %260 = vmatprep.subr.mxu0 0.0
    %261 = vmatpush1.msra.mxu0 0.0
    %262 = vmatprep.subr.mxu0 0.0
    %263 = vmatpush1.msra.mxu0 0.0
    %264 = vmatprep.subr.mxu0 0.0
    %265 = vmatpush1.msra.mxu0 %v32
    %266 = vmatprep.subr.mxu0 0.0
    %267 = vmatpush1.msra.mxu0 %v31
    %268 = vmatprep.subr.mxu0 0.0
    %269 = vmatpush1.msra.mxu0 %v30
    %270 = vmatprep.subr.mxu0 0.0
    %271 = vmatpush1.msra.mxu0 %v29
    %272 = vmatprep.subr.mxu0 0.0
    %273 = vmatpush2.msra.mxu0 0.0
    %274 = vmatprep.subr.mxu0 0.0
    %275 = vmatpush2.msra.mxu0 0.0
    %276 = vmatprep.subr.mxu0 0.0
    %277 = vmatpush2.msra.mxu0 0.0
    %278 = vmatprep.subr.mxu0 0.0
    %279 = vmatpush2.msra.mxu0 0.0
    %280 = vmatprep.subr.mxu0 0.0
    %281 = vmatpush2.msra.mxu0 0.0
    %282 = vmatprep.subr.mxu0 0.0
    %283 = vmatpush2.msra.mxu0 0.0
    %284 = vmatprep.subr.mxu0 0.0
    %285 = vmatpush2.msra.mxu0 0.0
    %286 = vmatprep.subr.mxu0 0.0
    %287 = vmatpush2.msra.mxu0 0.0
    %288 = vmatprep.subr.mxu0 0.0
    %289 = vmatpush2.msra.mxu0 0.0
    %290 = vmatprep.subr.mxu0 0.0
    %291 = vmatpush2.msra.mxu0 0.0
    %292 = vmatprep.subr.mxu0 0.0
    %293 = vmatpush2.msra.mxu0 0.0
    %294 = vmatprep.subr.mxu0 0.0
    %295 = vmatpush2.msra.mxu0 0.0
    %296 = vmatprep.subr.mxu0 0.0
    %297 = vmatpush2.msra.mxu0 0.0
    %298 = vmatprep.subr.mxu0 0.0
    %299 = vmatpush2.msra.mxu0 0.0
    %300 = vmatprep.subr.mxu0 0.0
    %301 = vmatpush2.msra.mxu0 0.0
    %302 = vmatprep.subr.mxu0 0.0
    %303 = vmatpush2.msra.mxu0 0.0
    %304 = vmatprep.mubr.f32.mxu0 0.0
    %305 = vmatmul.mubr.f32.gmra.mxu0 %v217
    %v306 = vpop.f32.mrf.mxu0
    %v307 = vadd.f32 0.0, %v306
    %v308 = vpop.f32.mrf.mxu0
    %309 = vmatprep.mubr.f32.mxu0 0.0
    %310 = vmatmul.mubr.f32.gmra.mxu0 %v220
    %v311 = vpop.f32.mrf.mxu0
    %v312 = vadd.f32 0.0, %v311
    %v313 = vpop.f32.mrf.mxu0
    %314 = vmatprep.mubr.f32.mxu0 0.0
    %315 = vmatmul.mubr.f32.gmra.mxu0 %v223
    %v316 = vpop.f32.mrf.mxu0
    %v317 = vadd.f32 0.0, %v316
    %v318 = vpop.f32.mrf.mxu0
    %319 = vmatprep.mubr.f32.mxu0 0.0
    %320 = vmatmul.mubr.f32.gmra.mxu0 %v226
    %v321 = vpop.f32.mrf.mxu0
    %v322 = vadd.f32 0.0, %v321
    %v323 = vpop.f32.mrf.mxu0
    %324 = vmatprep.mubr.f32.mxu0 0.0
    %325 = vmatmul.mubr.f32.gmra.mxu0 %v229
    %v326 = vpop.f32.mrf.mxu0
    %v327 = vadd.f32 0.0, %v326
    %v328 = vpop.f32.mrf.mxu0
    %329 = vmatprep.mubr.f32.mxu0 0.0
    %330 = vmatmul.mubr.f32.gmra.mxu0 %v232
    %v331 = vpop.f32.mrf.mxu0
    %v332 = vadd.f32 0.0, %v331
    %v333 = vpop.f32.mrf.mxu0
    %334 = vmatprep.mubr.f32.mxu0 0.0
    %335 = vmatmul.mubr.f32.gmra.mxu0 %v235
    %v336 = vpop.f32.mrf.mxu0
    %v337 = vadd.f32 0.0, %v336
    %v338 = vpop.f32.mrf.mxu0
    %339 = vmatprep.mubr.f32.mxu0 0.0
    %340 = vmatmul.mubr.f32.gmra.mxu0 %v238
    %v341 = vpop.f32.mrf.mxu0
    %v342 = vadd.f32 0.0, %v341
    %v343 = vpop.f32.mrf.mxu0
    %344 = vdwg.mxu0
    %v345 = vadd.f32 %v149, %v307
    %v346 = vadd.f32 %v154, %v312
    %v347 = vadd.f32 %v159, %v317
    %v348 = vadd.f32 %v164, %v322
    %v349 = vadd.f32 %v169, %v327
    %v350 = vadd.f32 %v174, %v332
    %v351 = vadd.f32 %v179, %v337
    %v352 = vadd.f32 %v184, %v342
    %v353 = vld [vmem:[%s5] sm:$0xff]
    %v354 = vld [vmem:[%s5 + $0x8] sm:$0xff]
    %v355 = vld [vmem:[%s5 + $0x10] sm:$0xff]
    %v356 = vld [vmem:[%s5 + $0x18] sm:$0xff]
    %v357 = vld [vmem:[%s5 + $0x20] sm:$0xff]
    %v358 = vld [vmem:[%s5 + $0x28] sm:$0xff]
    %v359 = vld [vmem:[%s5 + $0x30] sm:$0xff]
    %v360 = vld [vmem:[%s5 + $0x38] sm:$0xff]
    %362 = vset.pattern.permute.xlu0 0
    %363 = vperm.xlu0 %362, %v353
    %v364 = vpop.permute.xlu0 %363
    %367 = vset.pattern.permute.xlu0 0
    %368 = vperm.xlu0 %367, %v354
    %v369 = vpop.permute.xlu0 %368
    %372 = vset.pattern.permute.xlu0 0
    %373 = vperm.xlu0 %372, %v355
    %v374 = vpop.permute.xlu0 %373
    %377 = vset.pattern.permute.xlu0 0
    %378 = vperm.xlu0 %377, %v356
    %v379 = vpop.permute.xlu0 %378
    %382 = vset.pattern.permute.xlu0 0
    %383 = vperm.xlu0 %382, %v357
    %v384 = vpop.permute.xlu0 %383
    %387 = vset.pattern.permute.xlu0 0
    %388 = vperm.xlu0 %387, %v358
    %v389 = vpop.permute.xlu0 %388
    %392 = vset.pattern.permute.xlu0 0
    %393 = vperm.xlu0 %392, %v359
    %v394 = vpop.permute.xlu0 %393
    %397 = vset.pattern.permute.xlu0 0
    %398 = vperm.xlu0 %397, %v360
    %v399 = vpop.permute.xlu0 %398
    %v401 = vadd.f32 %v345, %v364
    %v402 = vadd.f32 %v346, %v369
    %v403 = vadd.f32 %v347, %v374
    %v404 = vadd.f32 %v348, %v379
    %v405 = vadd.f32 %v349, %v384
    %v406 = vadd.f32 %v350, %v389
    %v407 = vadd.f32 %v351, %v394
    %v408 = vadd.f32 %v352, %v399
    %v409 = vxor.u32 %v401, 2147483648
    %v410 = vxor.u32 %v402, 2147483648
    %v411 = vxor.u32 %v403, 2147483648
    %v412 = vxor.u32 %v404, 2147483648
    %v413 = vmul.f32 %v409, 1.442695
    %v414 = vpow.pop %v413
    %v415 = vmul.f32 %v410, 1.442695
    %v416 = vpow.pop %v415
    %v417 = vmul.f32 %v411, 1.442695
    %v418 = vpow.pop %v417
    %v419 = vmul.f32 %v412, 1.442695
    %v420 = vpow.pop %v419
    %v421 = vadd.f32 %v414, 1.0
    %v422 = vadd.f32 %v416, 1.0
    %v423 = vadd.f32 %v418, 1.0
    %v424 = vadd.f32 %v420, 1.0
    %v425 = vrcp.pop %v421
    %v426 = vmul.f32 1.0, %v425
    %v427 = vrcp.pop %v422
    %v428 = vmul.f32 1.0, %v427
    %v429 = vrcp.pop %v423
    %v430 = vmul.f32 1.0, %v429
    %v431 = vrcp.pop %v424
    %v432 = vmul.f32 1.0, %v431
    %v433 = vxor.u32 %v405, 2147483648
    %v434 = vxor.u32 %v406, 2147483648
    %v435 = vxor.u32 %v407, 2147483648
    %v436 = vxor.u32 %v408, 2147483648
    %v437 = vmul.f32 %v433, 1.442695
    %v438 = vpow.pop %v437
    %v439 = vmul.f32 %v434, 1.442695
    %v440 = vpow.pop %v439
    %v441 = vmul.f32 %v435, 1.442695
    %v442 = vpow.pop %v441
    %v443 = vmul.f32 %v436, 1.442695
    %v444 = vpow.pop %v443
    %v445 = vadd.f32 %v438, 1.0
    %v446 = vadd.f32 %v440, 1.0
    %v447 = vadd.f32 %v442, 1.0
    %v448 = vadd.f32 %v444, 1.0
    %v449 = vrcp.pop %v445
    %v450 = vmul.f32 1.0, %v449
    %v451 = vrcp.pop %v446
    %v452 = vmul.f32 1.0, %v451
    %v453 = vrcp.pop %v447
    %v454 = vmul.f32 1.0, %v453
    %v455 = vrcp.pop %v448
    %v456 = vmul.f32 1.0, %v455
    %v457 = vmul.f32 %v426, %v29
    %v458 = vmul.f32 %v428, %v30
    %v459 = vmul.f32 %v430, %v31
    %v460 = vmul.f32 %v432, %v32
    %v461 = vld [vmem:[%s4] sm:$0xff]
    %v462 = vld [vmem:[%s4 + $0x8] sm:$0xff]
    %v463 = vld [vmem:[%s4 + $0x10] sm:$0xff]
    %v464 = vld [vmem:[%s4 + $0x18] sm:$0xff]
    %v466 = vsel %vm215, %v461, 0
    %v469 = vsel %vm215, %v462, 0
    %v472 = vsel %vm215, %v463, 0
    %v475 = vsel %vm215, %v464, 0
    %477 = vmatprep.subr.mxu0 0.0
    %478 = vmatpush1.msra.mxu0 0.0
    %479 = vmatprep.subr.mxu0 0.0
    %480 = vmatpush1.msra.mxu0 0.0
    %481 = vmatprep.subr.mxu0 0.0
    %482 = vmatpush1.msra.mxu0 0.0
    %483 = vmatprep.subr.mxu0 0.0
    %484 = vmatpush1.msra.mxu0 0.0
    %485 = vmatprep.subr.mxu0 0.0
    %486 = vmatpush1.msra.mxu0 0.0
    %487 = vmatprep.subr.mxu0 0.0
    %488 = vmatpush1.msra.mxu0 0.0
    %489 = vmatprep.subr.mxu0 0.0
    %490 = vmatpush1.msra.mxu0 0.0
    %491 = vmatprep.subr.mxu0 0.0
    %492 = vmatpush1.msra.mxu0 0.0
    %493 = vmatprep.subr.mxu0 0.0
    %494 = vmatpush1.msra.mxu0 0.0
    %495 = vmatprep.subr.mxu0 0.0
    %496 = vmatpush1.msra.mxu0 0.0
    %497 = vmatprep.subr.mxu0 0.0
    %498 = vmatpush1.msra.mxu0 0.0
    %499 = vmatprep.subr.mxu0 0.0
    %500 = vmatpush1.msra.mxu0 0.0
    %501 = vmatprep.subr.mxu0 0.0
    %502 = vmatpush1.msra.mxu0 %v460
    %503 = vmatprep.subr.mxu0 0.0
    %504 = vmatpush1.msra.mxu0 %v459
    %505 = vmatprep.subr.mxu0 0.0
    %506 = vmatpush1.msra.mxu0 %v458
    %507 = vmatprep.subr.mxu0 0.0
    %508 = vmatpush1.msra.mxu0 %v457
    %509 = vmatprep.subr.mxu0 0.0
    %510 = vmatpush2.msra.mxu0 0.0
    %511 = vmatprep.subr.mxu0 0.0
    %512 = vmatpush2.msra.mxu0 0.0
    %513 = vmatprep.subr.mxu0 0.0
    %514 = vmatpush2.msra.mxu0 0.0
    %515 = vmatprep.subr.mxu0 0.0
    %516 = vmatpush2.msra.mxu0 0.0
    %517 = vmatprep.subr.mxu0 0.0
    %518 = vmatpush2.msra.mxu0 0.0
    %519 = vmatprep.subr.mxu0 0.0
    %520 = vmatpush2.msra.mxu0 0.0
    %521 = vmatprep.subr.mxu0 0.0
    %522 = vmatpush2.msra.mxu0 0.0
    %523 = vmatprep.subr.mxu0 0.0
    %524 = vmatpush2.msra.mxu0 0.0
    %525 = vmatprep.subr.mxu0 0.0
    %526 = vmatpush2.msra.mxu0 0.0
    %527 = vmatprep.subr.mxu0 0.0
    %528 = vmatpush2.msra.mxu0 0.0
    %529 = vmatprep.subr.mxu0 0.0
    %530 = vmatpush2.msra.mxu0 0.0
    %531 = vmatprep.subr.mxu0 0.0
    %532 = vmatpush2.msra.mxu0 0.0
    %533 = vmatprep.subr.mxu0 0.0
    %534 = vmatpush2.msra.mxu0 0.0
    %535 = vmatprep.subr.mxu0 0.0
    %536 = vmatpush2.msra.mxu0 0.0
    %537 = vmatprep.subr.mxu0 0.0
    %538 = vmatpush2.msra.mxu0 0.0
    %539 = vmatprep.subr.mxu0 0.0
    %540 = vmatpush2.msra.mxu0 0.0
    %541 = vmatprep.mubr.f32.mxu0 0.0
    %542 = vmatmul.mubr.f32.gmra.mxu0 %v466
    %v543 = vpop.f32.mrf.mxu0
    %v544 = vadd.f32 0.0, %v543
    %v545 = vpop.f32.mrf.mxu0
    %546 = vmatprep.mubr.f32.mxu0 0.0
    %547 = vmatmul.mubr.f32.gmra.mxu0 %v469
    %v548 = vpop.f32.mrf.mxu0
    %v549 = vadd.f32 0.0, %v548
    %v550 = vpop.f32.mrf.mxu0
    %551 = vmatprep.mubr.f32.mxu0 0.0
    %552 = vmatmul.mubr.f32.gmra.mxu0 %v472
    %v553 = vpop.f32.mrf.mxu0
    %v554 = vadd.f32 0.0, %v553
    %v555 = vpop.f32.mrf.mxu0
    %556 = vmatprep.mubr.f32.mxu0 0.0
    %557 = vmatmul.mubr.f32.gmra.mxu0 %v475
    %v558 = vpop.f32.mrf.mxu0
    %v559 = vadd.f32 0.0, %v558
    %v560 = vpop.f32.mrf.mxu0
    %561 = vdwg.mxu0
    %v562 = vadd.f32 %v189, %v544
    %v563 = vadd.f32 %v194, %v549
    %v564 = vadd.f32 %v199, %v554
    %v565 = vadd.f32 %v204, %v559
    %v566 = vld [vmem:[%s6] sm:$0xff]
    %v567 = vld [vmem:[%s6 + $0x8] sm:$0xff]
    %v568 = vld [vmem:[%s6 + $0x10] sm:$0xff]
    %v569 = vld [vmem:[%s6 + $0x18] sm:$0xff]
    %571 = vset.pattern.permute.xlu0 0
    %572 = vperm.xlu0 %571, %v566
    %v573 = vpop.permute.xlu0 %572
    %576 = vset.pattern.permute.xlu0 0
    %577 = vperm.xlu0 %576, %v567
    %v578 = vpop.permute.xlu0 %577
    %581 = vset.pattern.permute.xlu0 0
    %582 = vperm.xlu0 %581, %v568
    %v583 = vpop.permute.xlu0 %582
    %586 = vset.pattern.permute.xlu0 0
    %587 = vperm.xlu0 %586, %v569
    %v588 = vpop.permute.xlu0 %587
    %v590 = vadd.f32 %v562, %v573
    %v591 = vadd.f32 %v563, %v578
    %v592 = vadd.f32 %v564, %v583
    %v593 = vadd.f32 %v565, %v588
    %v594 = vtanh.pop %v590
    %v595 = vtanh.pop %v591
    %v596 = vtanh.pop %v592
    %v597 = vtanh.pop %v593
    %v598 = vmul.f32 %v450, %v29
    %v599 = vmul.f32 %v452, %v30
    %v600 = vmul.f32 %v454, %v31
    %v601 = vmul.f32 %v456, %v32
    %v602 = vsub.f32 1.0, %v450
    %v603 = vsub.f32 1.0, %v452
    %v604 = vsub.f32 1.0, %v454
    %v605 = vsub.f32 1.0, %v456
    %v606 = vmul.f32 %v602, %v594
    %v607 = vmul.f32 %v603, %v595
    %v608 = vmul.f32 %v604, %v596
    %v609 = vmul.f32 %v605, %v597
    %v610 = vadd.f32 %v598, %v606
    %v611 = vadd.f32 %v599, %v607
    %v612 = vadd.f32 %v600, %v608
    %v613 = vadd.f32 %v601, %v609
    %614 = vst [vmem:[#allocation2] sm:$0xff] %v610
    %615 = vst [vmem:[#allocation2 + $0x8] sm:$0xff] %v611
    %616 = vst [vmem:[#allocation2 + $0x10] sm:$0xff] %v612
    %617 = vst [vmem:[#allocation2 + $0x18] sm:$0xff] %v613
    // Predicated region
    $region30: #{tpu_custom_call.1} parent=1 // pred_check
      _
    $region31: #{tpu_custom_call.1} parent=1 // pred_check_branch
      %619 = sbr.rel (0) target = $region33
    $region32: #{tpu_custom_call.1} parent=1 // pred_region
      %s621 = ssub.s32 512, 512
      %622 = vsyncadd [#allocation3], %s621
      %s623 = sshll.u32 [#allocation2], 4
      %s624 = int_to_ptr.vmem [resolvable:$true] %s623
      %629 = dma.vmem_to_hbm [thread:$0]  %s624, 512, %s7, [#allocation3], 128, 128, 8
    $region33: #{tpu_custom_call.1} parent=1 // pred_fallthru
      _
    // Predicated region
    $region34: #{tpu_custom_call.1} parent=1 // pred_check
      _
    $region35: #{tpu_custom_call.1} parent=1 // pred_check_branch
      %631 = sbr.rel (0) target = $region37
    $region36: #{tpu_custom_call.1} parent=1 // pred_region
      %632 = dma.done [#allocation3], 512
    $region37: #{tpu_custom_call.1} parent=1 // pred_fallthru
      _
    %633 = vsyncpa [#allocation3], 1

</llo_original>
